<compile_context>
chip_gen: v5e
topology: v5e:2x2
jax: 0.10.0
libtpu: 0.0.40
codegen_flags: <defaults>
</compile_context>

<pallas_src>
import functools

import jax
import jax.numpy as jnp
from jax.experimental import pallas as pl
from jax.experimental.pallas import tpu as pltpu

N_LAYERS = 7
LAYER_SIZE = 100
IN_DIM = 4
OUT_DIM = 6
N_HIDDEN = N_LAYERS - 2  # number of (Linear(100,100), Tanh) pairs = 5

IN_PAD = 8      # x / w_in padded input-feature width (zero columns/rows)
OUT_PAD = 128   # lane-dense padded output width (zero weight columns / bias)


def _pinn_kernel(x_ref, w_in_ref, b_in_ref, w_h_ref, b_h_ref,
                 w_out_ref, b_out_ref, o_ref):
    # Compute dtype for the hidden/output matmuls & tanh is taken from the
    # hidden-weight dtype (f32 or bf16); accumulation is always f32 on the MXU.
    cdt = w_h_ref.dtype

    # First layer: (TB, 8) @ (8, 100) + (1, 100) -> tanh.  Kept in f32 (tiny K).
    h = jnp.tanh(
        jnp.dot(x_ref[...], w_in_ref[...], preferred_element_type=jnp.float32)
        + b_in_ref[...]
    ).astype(cdt)

    # Hidden layers: static Python loop (5 iters) — stays unrolled on purpose
    # so the LLO scheduler sees the whole instruction stream.
    for l in range(N_HIDDEN):
        z = (jnp.dot(h, w_h_ref[l], preferred_element_type=jnp.float32)
             + b_h_ref[l])
        h = jnp.tanh(z.astype(cdt))  # bf16 tanh on v6e/v7x when cdt == bf16

    # Output layer: (TB, 100) @ (100, 128) + (1, 128); columns 6..127 are zero
    # (zero-padded weights/bias) so the store is a single unmasked, lane-dense
    # slab.  Wrapper slices back to OUT_DIM.
    out = (jnp.dot(h, w_out_ref[...], preferred_element_type=jnp.float32)
           + b_out_ref[...])
    o_ref[...] = out.astype(o_ref.dtype)


@functools.partial(jax.jit, static_argnames=("tile_b", "use_bf16"))
def pinn_forward(x, w_in, b_in, w_h, b_h, w_out, b_out, *,
                 tile_b=512, use_bf16=False):
    n = x.shape[0]
    assert x.shape[1] == IN_DIM

    # Pick the batch tile: large enough to amortize the ~0.35us/step grid
    # overhead, but keep >= 2 grid steps when the batch allows it so both v7x
    # TensorCores get work on the "parallel" axis.
    tb = int(tile_b)
    while tb > 128 and n <= tb:
        tb //= 2
    tb = max(tb, 128)
    grid_n = pl.cdiv(n, tb)
    n_pad = grid_n * tb

    cdt = jnp.bfloat16 if use_bf16 else jnp.float32

    # Wrapper-side padding / casting (cheap; keeps the kernel lane-dense).
    x_p = jnp.zeros((n_pad, IN_PAD), jnp.float32).at[:n, :IN_DIM].set(x)
    w_in_p = jnp.zeros((IN_PAD, LAYER_SIZE), jnp.float32).at[:IN_DIM, :].set(w_in)
    b_in_2d = b_in.reshape(1, LAYER_SIZE).astype(jnp.float32)
    w_h_c = w_h.astype(cdt)
    b_h_3d = b_h.reshape(N_HIDDEN, 1, LAYER_SIZE).astype(jnp.float32)
    w_out_p = (jnp.zeros((LAYER_SIZE, OUT_PAD), jnp.float32)
               .at[:, :OUT_DIM].set(w_out)).astype(cdt)
    b_out_p = jnp.zeros((1, OUT_PAD), jnp.float32).at[:, :OUT_DIM].set(
        b_out.reshape(1, OUT_DIM))

    # Note: all weight/bias specs use a constant index_map, which suppresses
    # per-step re-DMA; only the x / out tiles stream per grid step.
    out = pl.pallas_call(
        _pinn_kernel,
        out_shape=jax.ShapeDtypeStruct((n_pad, OUT_PAD), jnp.float32),
        grid_spec=pltpu.PrefetchScalarGridSpec(
            num_scalar_prefetch=0,
            grid=(grid_n,),
            in_specs=[
                pl.BlockSpec((tb, IN_PAD), lambda i: (i, 0)),
                pl.BlockSpec((IN_PAD, LAYER_SIZE), lambda i: (0, 0)),
                pl.BlockSpec((1, LAYER_SIZE), lambda i: (0, 0)),
                pl.BlockSpec((N_HIDDEN, LAYER_SIZE, LAYER_SIZE),
                             lambda i: (0, 0, 0)),
                pl.BlockSpec((N_HIDDEN, 1, LAYER_SIZE), lambda i: (0, 0, 0)),
                pl.BlockSpec((LAYER_SIZE, OUT_PAD), lambda i: (0, 0)),
                pl.BlockSpec((1, OUT_PAD), lambda i: (0, 0)),
            ],
            out_specs=pl.BlockSpec((tb, OUT_PAD), lambda i: (i, 0)),
        ),
        compiler_params=pltpu.CompilerParams(
            dimension_semantics=("parallel",),
            vmem_limit_bytes=32 * 1024 * 1024,
        ),
    )(x_p, w_in_p, b_in_2d, w_h_c, b_h_3d, w_out_p, b_out_p)

    return out[:n, :OUT_DIM]


def _torch_linear_init(key, fan_in, fan_out):
    """Deterministic init mimicking torch.nn.Linear default U(-1/sqrt(in), 1/sqrt(in))."""
    kw, kb = jax.random.split(key)
    bound = 1.0 / jnp.sqrt(float(fan_in))
    # Stored as (in_features, out_features) so the kernel does x @ W + b.
    w = jax.random.uniform(kw, (fan_in, fan_out), jnp.float32, -bound, bound)
    b = jax.random.uniform(kb, (fan_out,), jnp.float32, -bound, bound)
    return w, b


def make_params(key):
    keys = jax.random.split(key, N_LAYERS)
    w_in, b_in = _torch_linear_init(keys[0], IN_DIM, LAYER_SIZE)
    w_h_list, b_h_list = [], []
    for l in range(N_HIDDEN):
        w, b = _torch_linear_init(keys[1 + l], LAYER_SIZE, LAYER_SIZE)
        w_h_list.append(w)
        b_h_list.append(b)
    w_out, b_out = _torch_linear_init(keys[-1], LAYER_SIZE, OUT_DIM)
    return dict(
        w_in=w_in,                              # (4, 100)
        b_in=b_in,                              # (100,)
        w_h=jnp.stack(w_h_list, axis=0),        # (5, 100, 100)
        b_h=jnp.stack(b_h_list, axis=0),        # (5, 100)
        w_out=w_out,                            # (100, 6)
        b_out=b_out,                            # (6,)
    )


def pinn_reference(x, p, compute_dtype=jnp.float32):
    """Plain-JAX reference matching the PyTorch forward (with the same optional
    reduced-precision casts as the kernel's bf16 path)."""
    h = jnp.tanh(x @ p["w_in"] + p["b_in"]).astype(compute_dtype)
    for l in range(N_HIDDEN):
        z = jnp.dot(h, p["w_h"][l].astype(compute_dtype),
                    preferred_element_type=jnp.float32) + p["b_h"][l]
        h = jnp.tanh(z.astype(compute_dtype))
    return (jnp.dot(h, p["w_out"].astype(compute_dtype),
                    preferred_element_type=jnp.float32) + p["b_out"])


if __name__ == "__main__":
    key = jax.random.PRNGKey(0)
    k_param, k_x = jax.random.split(key)
    params = make_params(k_param)

    batch = 200  # deliberately ragged: wrapper pads batch to the tile size
    x = jax.random.normal(k_x, (batch, IN_DIM), jnp.float32)

    args = (x, params["w_in"], params["b_in"], params["w_h"],
            params["b_h"], params["w_out"], params["b_out"])

    # f32 path: matches the plain-JAX f32 reference tightly.
    out_f32 = jax.block_until_ready(
        pinn_forward(*args, tile_b=512, use_bf16=False))
    ref_f32 = jax.block_until_ready(pinn_reference(x, params, jnp.float32))
    assert out_f32.shape == (batch, OUT_DIM) and out_f32.dtype == jnp.float32
    assert jnp.allclose(out_f32, ref_f32, atol=1e-5, rtol=1e-5), \
        "f32 kernel mismatch vs reference"

    # bf16 fast path (v6e/v7x MXU/EUP win): compare against a reference that
    # applies the same casts, plus a loose sanity check vs the f32 reference.
    out_bf16 = jax.block_until_ready(
        pinn_forward(*args, tile_b=512, use_bf16=True))
    ref_bf16 = jax.block_until_ready(pinn_reference(x, params, jnp.bfloat16))
    assert jnp.allclose(out_bf16, ref_bf16, atol=2e-2, rtol=2e-2), \
        "bf16 kernel mismatch vs bf16 reference"
    assert jnp.allclose(out_bf16, ref_f32, atol=1e-1, rtol=1e-1), \
        "bf16 kernel too far from f32 reference"

    print("KERNEL_OK")
</pallas_src>

<mosaic_0001>
module attributes {stable_mosaic.version = 11 : i64} {
  func.func @_pinn_kernel(%arg0: i32, %arg1: memref<128x8xf32, #tpu.memory_space<vmem>>, %arg2: memref<8x100xf32, #tpu.memory_space<vmem>>, %arg3: memref<1x100xf32, #tpu.memory_space<vmem>>, %arg4: memref<5x100x100xf32, #tpu.memory_space<vmem>>, %arg5: memref<5x1x100xf32, #tpu.memory_space<vmem>>, %arg6: memref<100x128xf32, #tpu.memory_space<vmem>>, %arg7: memref<1x128xf32, #tpu.memory_space<vmem>>, %arg8: memref<128x128xf32, #tpu.memory_space<vmem>>) attributes {dimension_semantics = [#tpu.dimension_semantics<parallel>], iteration_bounds = array<i64: 2>, scalar_prefetch = 0 : i64, scratch_operands = 0 : i64, tpu.core_type = #tpu.core_type<tc>, window_params = [{transform_indices = @transform_0, window_bounds = array<i64: 128, 8>}, {pipeline_mode = #tpu.pipeline_mode<synchronous>, transform_indices = @transform_1, window_bounds = array<i64: 8, 100>}, {pipeline_mode = #tpu.pipeline_mode<synchronous>, transform_indices = @transform_2, window_bounds = array<i64: 1, 100>}, {pipeline_mode = #tpu.pipeline_mode<synchronous>, transform_indices = @transform_3, window_bounds = array<i64: 5, 100, 100>}, {pipeline_mode = #tpu.pipeline_mode<synchronous>, transform_indices = @transform_4, window_bounds = array<i64: 5, 1, 100>}, {pipeline_mode = #tpu.pipeline_mode<synchronous>, transform_indices = @transform_5, window_bounds = array<i64: 100, 128>}, {pipeline_mode = #tpu.pipeline_mode<synchronous>, transform_indices = @transform_6, window_bounds = array<i64: 1, 128>}, {transform_indices = @transform_7, window_bounds = array<i64: 128, 128>}]} {
    %c0 = arith.constant 0 : index
    %c0_0 = arith.constant 0 : index
    %0 = vector.load %arg1[%c0, %c0_0] : memref<128x8xf32, #tpu.memory_space<vmem>>, vector<128x8xf32>
    %c0_1 = arith.constant 0 : index
    %c0_2 = arith.constant 0 : index
    %1 = vector.load %arg2[%c0_1, %c0_2] : memref<8x100xf32, #tpu.memory_space<vmem>>, vector<8x100xf32>
    %cst = arith.constant dense<0.000000e+00> : vector<128x100xf32>
    %2 = tpu.matmul %0, %1, %cst {dimension_numbers = #tpu.dot_dimension_numbers<[1], [0], [0], [1], [0, 0, 1, 1], [], []>} : vector<128x8xf32>, vector<8x100xf32>, vector<128x100xf32> -> vector<128x100xf32>
    %c0_3 = arith.constant 0 : index
    %c0_4 = arith.constant 0 : index
    %3 = vector.load %arg3[%c0_3, %c0_4] : memref<1x100xf32, #tpu.memory_space<vmem>>, vector<1x100xf32>
    %4 = vector.broadcast %3 : vector<1x100xf32> to vector<128x100xf32>
    %5 = arith.addf %2, %4 : vector<128x100xf32>
    %6 = math.tanh %5 : vector<128x100xf32>
    %c0_5 = arith.constant 0 : index
    %c0_6 = arith.constant 0 : index
    %c0_7 = arith.constant 0 : index
    %7 = vector.load %arg4[%c0_5, %c0_6, %c0_7] : memref<5x100x100xf32, #tpu.memory_space<vmem>>, vector<1x100x100xf32>
    %8 = vector.shape_cast %7 : vector<1x100x100xf32> to vector<100x100xf32>
    %cst_8 = arith.constant dense<0.000000e+00> : vector<128x100xf32>
    %9 = tpu.matmul %6, %8, %cst_8 {dimension_numbers = #tpu.dot_dimension_numbers<[1], [0], [0], [1], [0, 0, 1, 1], [], []>} : vector<128x100xf32>, vector<100x100xf32>, vector<128x100xf32> -> vector<128x100xf32>
    %c0_9 = arith.constant 0 : index
    %c0_10 = arith.constant 0 : index
    %c0_11 = arith.constant 0 : index
    %10 = vector.load %arg5[%c0_9, %c0_10, %c0_11] : memref<5x1x100xf32, #tpu.memory_space<vmem>>, vector<1x1x100xf32>
    %11 = vector.shape_cast %10 : vector<1x1x100xf32> to vector<1x100xf32>
    %12 = vector.broadcast %11 : vector<1x100xf32> to vector<128x100xf32>
    %13 = arith.addf %9, %12 : vector<128x100xf32>
    %14 = math.tanh %13 : vector<128x100xf32>
    %c1 = arith.constant 1 : index
    %c0_12 = arith.constant 0 : index
    %c0_13 = arith.constant 0 : index
    %15 = vector.load %arg4[%c1, %c0_12, %c0_13] : memref<5x100x100xf32, #tpu.memory_space<vmem>>, vector<1x100x100xf32>
    %16 = vector.shape_cast %15 : vector<1x100x100xf32> to vector<100x100xf32>
    %cst_14 = arith.constant dense<0.000000e+00> : vector<128x100xf32>
    %17 = tpu.matmul %14, %16, %cst_14 {dimension_numbers = #tpu.dot_dimension_numbers<[1], [0], [0], [1], [0, 0, 1, 1], [], []>} : vector<128x100xf32>, vector<100x100xf32>, vector<128x100xf32> -> vector<128x100xf32>
    %c1_15 = arith.constant 1 : index
    %c0_16 = arith.constant 0 : index
    %c0_17 = arith.constant 0 : index
    %18 = vector.load %arg5[%c1_15, %c0_16, %c0_17] : memref<5x1x100xf32, #tpu.memory_space<vmem>>, vector<1x1x100xf32>
    %19 = vector.shape_cast %18 : vector<1x1x100xf32> to vector<1x100xf32>
    %20 = vector.broadcast %19 : vector<1x100xf32> to vector<128x100xf32>
    %21 = arith.addf %17, %20 : vector<128x100xf32>
    %22 = math.tanh %21 : vector<128x100xf32>
    %c2 = arith.constant 2 : index
    %c0_18 = arith.constant 0 : index
    %c0_19 = arith.constant 0 : index
    %23 = vector.load %arg4[%c2, %c0_18, %c0_19] : memref<5x100x100xf32, #tpu.memory_space<vmem>>, vector<1x100x100xf32>
    %24 = vector.shape_cast %23 : vector<1x100x100xf32> to vector<100x100xf32>
    %cst_20 = arith.constant dense<0.000000e+00> : vector<128x100xf32>
    %25 = tpu.matmul %22, %24, %cst_20 {dimension_numbers = #tpu.dot_dimension_numbers<[1], [0], [0], [1], [0, 0, 1, 1], [], []>} : vector<128x100xf32>, vector<100x100xf32>, vector<128x100xf32> -> vector<128x100xf32>
    %c2_21 = arith.constant 2 : index
    %c0_22 = arith.constant 0 : index
    %c0_23 = arith.constant 0 : index
    %26 = vector.load %arg5[%c2_21, %c0_22, %c0_23] : memref<5x1x100xf32, #tpu.memory_space<vmem>>, vector<1x1x100xf32>
    %27 = vector.shape_cast %26 : vector<1x1x100xf32> to vector<1x100xf32>
    %28 = vector.broadcast %27 : vector<1x100xf32> to vector<128x100xf32>
    %29 = arith.addf %25, %28 : vector<128x100xf32>
    %30 = math.tanh %29 : vector<128x100xf32>
    %c3 = arith.constant 3 : index
    %c0_24 = arith.constant 0 : index
    %c0_25 = arith.constant 0 : index
    %31 = vector.load %arg4[%c3, %c0_24, %c0_25] : memref<5x100x100xf32, #tpu.memory_space<vmem>>, vector<1x100x100xf32>
    %32 = vector.shape_cast %31 : vector<1x100x100xf32> to vector<100x100xf32>
    %cst_26 = arith.constant dense<0.000000e+00> : vector<128x100xf32>
    %33 = tpu.matmul %30, %32, %cst_26 {dimension_numbers = #tpu.dot_dimension_numbers<[1], [0], [0], [1], [0, 0, 1, 1], [], []>} : vector<128x100xf32>, vector<100x100xf32>, vector<128x100xf32> -> vector<128x100xf32>
    %c3_27 = arith.constant 3 : index
    %c0_28 = arith.constant 0 : index
    %c0_29 = arith.constant 0 : index
    %34 = vector.load %arg5[%c3_27, %c0_28, %c0_29] : memref<5x1x100xf32, #tpu.memory_space<vmem>>, vector<1x1x100xf32>
    %35 = vector.shape_cast %34 : vector<1x1x100xf32> to vector<1x100xf32>
    %36 = vector.broadcast %35 : vector<1x100xf32> to vector<128x100xf32>
    %37 = arith.addf %33, %36 : vector<128x100xf32>
    %38 = math.tanh %37 : vector<128x100xf32>
    %c4 = arith.constant 4 : index
    %c0_30 = arith.constant 0 : index
    %c0_31 = arith.constant 0 : index
    %39 = vector.load %arg4[%c4, %c0_30, %c0_31] : memref<5x100x100xf32, #tpu.memory_space<vmem>>, vector<1x100x100xf32>
    %40 = vector.shape_cast %39 : vector<1x100x100xf32> to vector<100x100xf32>
    %cst_32 = arith.constant dense<0.000000e+00> : vector<128x100xf32>
    %41 = tpu.matmul %38, %40, %cst_32 {dimension_numbers = #tpu.dot_dimension_numbers<[1], [0], [0], [1], [0, 0, 1, 1], [], []>} : vector<128x100xf32>, vector<100x100xf32>, vector<128x100xf32> -> vector<128x100xf32>
    %c4_33 = arith.constant 4 : index
    %c0_34 = arith.constant 0 : index
    %c0_35 = arith.constant 0 : index
    %42 = vector.load %arg5[%c4_33, %c0_34, %c0_35] : memref<5x1x100xf32, #tpu.memory_space<vmem>>, vector<1x1x100xf32>
    %43 = vector.shape_cast %42 : vector<1x1x100xf32> to vector<1x100xf32>
    %44 = vector.broadcast %43 : vector<1x100xf32> to vector<128x100xf32>
    %45 = arith.addf %41, %44 : vector<128x100xf32>
    %46 = math.tanh %45 : vector<128x100xf32>
    %c0_36 = arith.constant 0 : index
    %c0_37 = arith.constant 0 : index
    %47 = vector.load %arg6[%c0_36, %c0_37] : memref<100x128xf32, #tpu.memory_space<vmem>>, vector<100x128xf32>
    %cst_38 = arith.constant dense<0.000000e+00> : vector<128x128xf32>
    %48 = tpu.matmul %46, %47, %cst_38 {dimension_numbers = #tpu.dot_dimension_numbers<[1], [0], [0], [1], [0, 0, 1, 1], [], []>} : vector<128x100xf32>, vector<100x128xf32>, vector<128x128xf32> -> vector<128x128xf32>
    %c0_39 = arith.constant 0 : index
    %c0_40 = arith.constant 0 : index
    %49 = vector.load %arg7[%c0_39, %c0_40] : memref<1x128xf32, #tpu.memory_space<vmem>>, vector<1x128xf32>
    %50 = vector.broadcast %49 : vector<1x128xf32> to vector<128x128xf32>
    %51 = arith.addf %48, %50 : vector<128x128xf32>
    %c0_41 = arith.constant 0 : index
    %c0_42 = arith.constant 0 : index
    %52 = vector.load %arg8[%c0_41, %c0_42] : memref<128x128xf32, #tpu.memory_space<vmem>>, vector<128x128xf32>
    tpu.vector_store %arg8[%c0_41, %c0_42], %51 {strides = array<i32>} : memref<128x128xf32, #tpu.memory_space<vmem>>, vector<128x128xf32>,
    return
  }
  func.func @transform_0(%arg0: i32) -> (i32, i32) {
    %c0_i32 = arith.constant 0 : i32
    %c0_i32_0 = arith.constant 0 : i32
    return %arg0, %c0_i32 : i32, i32
  }
  func.func @transform_1(%arg0: i32) -> (i32, i32) {
    %c0_i32 = arith.constant 0 : i32
    %c0_i32_0 = arith.constant 0 : i32
    %c0_i32_1 = arith.constant 0 : i32
    return %c0_i32, %c0_i32_0 : i32, i32
  }
  func.func @transform_2(%arg0: i32) -> (i32, i32) {
    %c0_i32 = arith.constant 0 : i32
    %c0_i32_0 = arith.constant 0 : i32
    %c0_i32_1 = arith.constant 0 : i32
    return %c0_i32, %c0_i32_0 : i32, i32
  }
  func.func @transform_3(%arg0: i32) -> (i32, i32, i32) {
    %c0_i32 = arith.constant 0 : i32
    %c0_i32_0 = arith.constant 0 : i32
    %c0_i32_1 = arith.constant 0 : i32
    %c0_i32_2 = arith.constant 0 : i32
    return %c0_i32, %c0_i32_0, %c0_i32_1 : i32, i32, i32
  }
  func.func @transform_4(%arg0: i32) -> (i32, i32, i32) {
    %c0_i32 = arith.constant 0 : i32
    %c0_i32_0 = arith.constant 0 : i32
    %c0_i32_1 = arith.constant 0 : i32
    %c0_i32_2 = arith.constant 0 : i32
    return %c0_i32, %c0_i32_0, %c0_i32_1 : i32, i32, i32
  }
  func.func @transform_5(%arg0: i32) -> (i32, i32) {
    %c0_i32 = arith.constant 0 : i32
    %c0_i32_0 = arith.constant 0 : i32
    %c0_i32_1 = arith.constant 0 : i32
    return %c0_i32, %c0_i32_0 : i32, i32
  }
  func.func @transform_6(%arg0: i32) -> (i32, i32) {
    %c0_i32 = arith.constant 0 : i32
    %c0_i32_0 = arith.constant 0 : i32
    %c0_i32_1 = arith.constant 0 : i32
    return %c0_i32, %c0_i32_0 : i32, i32
  }
  func.func @transform_7(%arg0: i32) -> (i32, i32) {
    %c0_i32 = arith.constant 0 : i32
    %c0_i32_0 = arith.constant 0 : i32
    return %arg0, %c0_i32 : i32, i32
  }
}

</mosaic_0001>

<llo_original>
// kernel: pinn_forward.1
$region0: #{pinn_forward.1}
  #allocation0 [shape = 'u32[]', space=smem, size = 0x4, offset = 0x4, fixed_abs, tag = 'smem constant byte address 0x4 - core index']
  #allocation1 [shape = 'u32[72,128]{1,0:T(1,128)}', space=vmem, size = 0x9000, scoped, tag = 'internal scratch']
  %s0 = inlined_call_operand.vmem [shape: f32[256,8], index: 0, kind: input, shape index: {}]
  %s1 = inlined_call_operand.vmem [shape: f32[8,100], index: 1, kind: input, shape index: {}]
  %s2 = inlined_call_operand.vmem [shape: f32[1,100], index: 2, kind: input, shape index: {}]
  %s3 = inlined_call_operand.vmem [shape: f32[5,100,100], index: 3, kind: input, shape index: {}]
  %s4 = inlined_call_operand.vmem [shape: f32[5,1,100], index: 4, kind: input, shape index: {}]
  %s5 = inlined_call_operand.vmem [shape: f32[100,128], index: 5, kind: input, shape index: {}]
  %s6 = inlined_call_operand.vmem [shape: f32[1,128], index: 6, kind: input, shape index: {}]
  %s7 = inlined_call_operand.vmem [shape: f32[256,128], index: 7, kind: output, shape index: {}]
  %s8 = sld [smem:[#allocation0]]
  $region61: #{pinn_forward.1} parent=0
    _
  %s10 = ssub.s32 1, %s8
  %s11 = scalar_select 0, %s10, %s8
  loop: start=0, step=1, limit=4
  $region2: #{pinn_forward.1} parent=0 // loop_pre_header
    _
  $region3: #{pinn_forward.1} parent=0 // loop_header
    %s13 = sphi 0, %s17
    %p14 = scmp.ge.s32.totalorder %s13, 4
    %s23 = sphi 0, %s25
    %s26 = sphi 0, %s23
    %s27 = sphi 0, %s26
    %s43 = sphi 0, %s27
    %s47 = sphi 0, %s47
    %s49 = sphi 0, %s47
    %s50 = sphi 0, %s49
    %s64 = sphi 0, %s50
    %s68 = sphi 0, %s68
    %s70 = sphi 0, %s68
    %s71 = sphi 0, %s70
    %s85 = sphi 0, %s71
    %s89 = sphi 0, %s89
    %s91 = sphi 0, %s89
    %s92 = sphi 0, %s91
    %s106 = sphi 0, %s92
    %s110 = sphi 0, %s110
    %s112 = sphi 0, %s110
    %s113 = sphi 0, %s112
    %s127 = sphi 0, %s113
    %s131 = sphi 0, %s131
    %s133 = sphi 0, %s131
    %s134 = sphi 0, %s133
    %s148 = sphi 0, %s134
    %s152 = sphi 0, %s152
    %s154 = sphi 0, %s152
    %s155 = sphi 0, %s154
    %s169 = sphi 0, %s155
    %s175 = sphi 0, %s177
    %s178 = sphi 0, %s175
    %s179 = sphi 0, %s178
    %s195 = sphi 0, %s179
  $region4: #{pinn_forward.1} parent=0 // loop_header_branch
    %16 = sbr.rel (%p14) target = $region8
  $region5: #{pinn_forward.1} parent=0 // loop_body
    %s18 = ssub.s32 %s13, 1
    %s19 = ssub.s32 %s13, 2
    %s20 = sadd.s32 %s13, 1
    %s21 = ssub.s32 %s13, %s20
    %p22 = scmp.eq.s32.totalorder %s21, 0
    %s24 = sadd.s32 %s23, 1
    %s25 = scalar_select %p22, %s23, %s24
    %p28 = pneg %p22
    %p29 = scmp.eq.s32.totalorder %s13, 1
    %p30 = por %p28, %p29
    %p31 = scmp.ne.s32.totalorder %s23, %s26
    %p32 = scmp.eq.s32.totalorder %s13, 0
    %p33 = por %p31, %p32
    %p34 = scmp.ne.s32.totalorder %s23, %s26
    %p35 = scmp.eq.s32.totalorder %s18, 1
    %p36 = por %p34, %p35
    %p37 = scmp.ne.s32.totalorder %s26, %s27
    %p38 = scmp.eq.s32.totalorder %s18, 0
    %p39 = por %p37, %p38
    %p40 = scmp.ne.s32.totalorder %s26, %s27
    %p41 = scmp.eq.s32.totalorder %s19, 1
    %p42 = por %p40, %p41
    %p44 = scmp.ne.s32.totalorder %s27, %s43
    %p45 = scmp.eq.s32.totalorder %s19, 0
    %p46 = por %p44, %p45
    %s48 = sadd.s32 %s47, 1
    %p51 = scmp.eq.s32.totalorder %s13, 1
    %p52 = scmp.ne.s32.totalorder %s47, %s49
    %p53 = scmp.eq.s32.totalorder %s13, 0
    %p54 = por %p52, %p53
    %p55 = scmp.ne.s32.totalorder %s47, %s49
    %p56 = scmp.eq.s32.totalorder %s18, 1
    %p57 = por %p55, %p56
    %p58 = scmp.ne.s32.totalorder %s49, %s50
    %p59 = scmp.eq.s32.totalorder %s18, 0
    %p60 = por %p58, %p59
    %p61 = scmp.ne.s32.totalorder %s49, %s50
    %p62 = scmp.eq.s32.totalorder %s19, 1
    %p63 = por %p61, %p62
    %p65 = scmp.ne.s32.totalorder %s50, %s64
    %p66 = scmp.eq.s32.totalorder %s19, 0
    %p67 = por %p65, %p66
    %s69 = sadd.s32 %s68, 1
    %p72 = scmp.eq.s32.totalorder %s13, 1
    %p73 = scmp.ne.s32.totalorder %s68, %s70
    %p74 = scmp.eq.s32.totalorder %s13, 0
    %p75 = por %p73, %p74
    %p76 = scmp.ne.s32.totalorder %s68, %s70
    %p77 = scmp.eq.s32.totalorder %s18, 1
    %p78 = por %p76, %p77
    %p79 = scmp.ne.s32.totalorder %s70, %s71
    %p80 = scmp.eq.s32.totalorder %s18, 0
    %p81 = por %p79, %p80
    %p82 = scmp.ne.s32.totalorder %s70, %s71
    %p83 = scmp.eq.s32.totalorder %s19, 1
    %p84 = por %p82, %p83
    %p86 = scmp.ne.s32.totalorder %s71, %s85
    %p87 = scmp.eq.s32.totalorder %s19, 0
    %p88 = por %p86, %p87
    %s90 = sadd.s32 %s89, 1
    %p93 = scmp.eq.s32.totalorder %s13, 1
    %p94 = scmp.ne.s32.totalorder %s89, %s91
    %p95 = scmp.eq.s32.totalorder %s13, 0
    %p96 = por %p94, %p95
    %p97 = scmp.ne.s32.totalorder %s89, %s91
    %p98 = scmp.eq.s32.totalorder %s18, 1
    %p99 = por %p97, %p98
    %p100 = scmp.ne.s32.totalorder %s91, %s92
    %p101 = scmp.eq.s32.totalorder %s18, 0
    %p102 = por %p100, %p101
    %p103 = scmp.ne.s32.totalorder %s91, %s92
    %p104 = scmp.eq.s32.totalorder %s19, 1
    %p105 = por %p103, %p104
    %p107 = scmp.ne.s32.totalorder %s92, %s106
    %p108 = scmp.eq.s32.totalorder %s19, 0
    %p109 = por %p107, %p108
    %s111 = sadd.s32 %s110, 1
    %p114 = scmp.eq.s32.totalorder %s13, 1
    %p115 = scmp.ne.s32.totalorder %s110, %s112
    %p116 = scmp.eq.s32.totalorder %s13, 0
    %p117 = por %p115, %p116
    %p118 = scmp.ne.s32.totalorder %s110, %s112
    %p119 = scmp.eq.s32.totalorder %s18, 1
    %p120 = por %p118, %p119
    %p121 = scmp.ne.s32.totalorder %s112, %s113
    %p122 = scmp.eq.s32.totalorder %s18, 0
    %p123 = por %p121, %p122
    %p124 = scmp.ne.s32.totalorder %s112, %s113
    %p125 = scmp.eq.s32.totalorder %s19, 1
    %p126 = por %p124, %p125
    %p128 = scmp.ne.s32.totalorder %s113, %s127
    %p129 = scmp.eq.s32.totalorder %s19, 0
    %p130 = por %p128, %p129
    %s132 = sadd.s32 %s131, 1
    %p135 = scmp.eq.s32.totalorder %s13, 1
    %p136 = scmp.ne.s32.totalorder %s131, %s133
    %p137 = scmp.eq.s32.totalorder %s13, 0
    %p138 = por %p136, %p137
    %p139 = scmp.ne.s32.totalorder %s131, %s133
    %p140 = scmp.eq.s32.totalorder %s18, 1
    %p141 = por %p139, %p140
    %p142 = scmp.ne.s32.totalorder %s133, %s134
    %p143 = scmp.eq.s32.totalorder %s18, 0
    %p144 = por %p142, %p143
    %p145 = scmp.ne.s32.totalorder %s133, %s134
    %p146 = scmp.eq.s32.totalorder %s19, 1
    %p147 = por %p145, %p146
    %p149 = scmp.ne.s32.totalorder %s134, %s148
    %p150 = scmp.eq.s32.totalorder %s19, 0
    %p151 = por %p149, %p150
    %s153 = sadd.s32 %s152, 1
    %p156 = scmp.eq.s32.totalorder %s13, 1
    %p157 = scmp.ne.s32.totalorder %s152, %s154
    %p158 = scmp.eq.s32.totalorder %s13, 0
    %p159 = por %p157, %p158
    %p160 = scmp.ne.s32.totalorder %s152, %s154
    %p161 = scmp.eq.s32.totalorder %s18, 1
    %p162 = por %p160, %p161
    %p163 = scmp.ne.s32.totalorder %s154, %s155
    %p164 = scmp.eq.s32.totalorder %s18, 0
    %p165 = por %p163, %p164
    %p166 = scmp.ne.s32.totalorder %s154, %s155
    %p167 = scmp.eq.s32.totalorder %s19, 1
    %p168 = por %p166, %p167
    %p170 = scmp.ne.s32.totalorder %s155, %s169
    %p171 = scmp.eq.s32.totalorder %s19, 0
    %p172 = por %p170, %p171
    %s173 = ssub.s32 %s13, %s20
    %p174 = scmp.eq.s32.totalorder %s173, 0
    %s176 = sadd.s32 %s175, 1
    %s177 = scalar_select %p174, %s175, %s176
    %p180 = pneg %p174
    %p181 = scmp.eq.s32.totalorder %s13, 1
    %p182 = por %p180, %p181
    %p183 = scmp.ne.s32.totalorder %s175, %s178
    %p184 = scmp.eq.s32.totalorder %s13, 0
    %p185 = por %p183, %p184
    %p186 = scmp.ne.s32.totalorder %s175, %s178
    %p187 = scmp.eq.s32.totalorder %s18, 1
    %p188 = por %p186, %p187
    %p189 = scmp.ne.s32.totalorder %s178, %s179
    %p190 = scmp.eq.s32.totalorder %s18, 0
    %p191 = por %p189, %p190
    %p192 = scmp.ne.s32.totalorder %s178, %s179
    %p193 = scmp.eq.s32.totalorder %s19, 1
    %p194 = por %p192, %p193
    %p196 = scmp.ne.s32.totalorder %s179, %s195
    %p197 = scmp.eq.s32.totalorder %s19, 0
    %p198 = por %p196, %p197
    %p199 = scmp.le.s32.totalorder 1, %s13
    %p200 = scmp.lt.s32.totalorder %s13, 3
    %p201 = pnand %p199, %p200
    %p202 = pneg %p201
    // Predicated region
    $region9: #{pinn_forward.1} parent=5 // pred_check
      _
    $region10: #{pinn_forward.1} parent=5 // pred_check_branch
      %204 = sbr.rel (%p201) target = $region12
    $region11: #{pinn_forward.1} parent=5 // pred_region
      %s205 = ssub.s32 %s13, 1
      // Predicated region
      $region13: #{pinn_forward.1} parent=11 // pred_check
        %p206 = pneg %p60
      $region14: #{pinn_forward.1} parent=11 // pred_check_branch
        %208 = sbr.rel (%p206) target = $region16
      $region15: #{pinn_forward.1} parent=11 // pred_region
        _
      $region16: #{pinn_forward.1} parent=11 // pred_fallthru
        _
      // Predicated region
      $region17: #{pinn_forward.1} parent=11 // pred_check
        %p209 = pneg %p81
      $region18: #{pinn_forward.1} parent=11 // pred_check_branch
        %211 = sbr.rel (%p209) target = $region20
      $region19: #{pinn_forward.1} parent=11 // pred_region
        _
      $region20: #{pinn_forward.1} parent=11 // pred_fallthru
        _
      // Predicated region
      $region21: #{pinn_forward.1} parent=11 // pred_check
        %p212 = pneg %p102
      $region22: #{pinn_forward.1} parent=11 // pred_check_branch
        %214 = sbr.rel (%p212) target = $region24
      $region23: #{pinn_forward.1} parent=11 // pred_region
        _
      $region24: #{pinn_forward.1} parent=11 // pred_fallthru
        _
      // Predicated region
      $region25: #{pinn_forward.1} parent=11 // pred_check
        %p215 = pneg %p123
      $region26: #{pinn_forward.1} parent=11 // pred_check_branch
        %217 = sbr.rel (%p215) target = $region28
      $region27: #{pinn_forward.1} parent=11 // pred_region
        _
      $region28: #{pinn_forward.1} parent=11 // pred_fallthru
        _
      // Predicated region
      $region29: #{pinn_forward.1} parent=11 // pred_check
        %p218 = pneg %p144
      $region30: #{pinn_forward.1} parent=11 // pred_check_branch
        %220 = sbr.rel (%p218) target = $region32
      $region31: #{pinn_forward.1} parent=11 // pred_region
        _
      $region32: #{pinn_forward.1} parent=11 // pred_fallthru
        _
      // Predicated region
      $region33: #{pinn_forward.1} parent=11 // pred_check
        %p221 = pneg %p165
      $region34: #{pinn_forward.1} parent=11 // pred_check_branch
        %223 = sbr.rel (%p221) target = $region36
      $region35: #{pinn_forward.1} parent=11 // pred_region
        _
      $region36: #{pinn_forward.1} parent=11 // pred_fallthru
        _
    $region12: #{pinn_forward.1} parent=5 // pred_fallthru
      _
    %p224 = scmp.lt.s32.totalorder %s13, 2
    // Predicated region
    $region37: #{pinn_forward.1} parent=5 // pred_check
      %p225 = pneg %p224
    $region38: #{pinn_forward.1} parent=5 // pred_check_branch
      %227 = sbr.rel (%p225) target = $region40
    $region39: #{pinn_forward.1} parent=5 // pred_region
      // Predicated region
      $region41: #{pinn_forward.1} parent=39 // pred_check
        %p228 = pneg %p33
      $region42: #{pinn_forward.1} parent=39 // pred_check_branch
        %230 = sbr.rel (%p228) target = $region44
      $region43: #{pinn_forward.1} parent=39 // pred_region
        %s231 = smul.u32 16, %s13
        %p232 = scmp.lt.s32.totalorder %s231, 31
        %s233 = scalar_select %p232, %s231, 31
        %s234 = smul.addr %s233, 8
        %s235 = scalar_lea.vmem %s0, %s234
        %s236 = smul.u32 16, %s13
      $region44: #{pinn_forward.1} parent=39 // pred_fallthru
        _
    $region40: #{pinn_forward.1} parent=5 // pred_fallthru
      _
    %p237 = scmp.le.s32.totalorder 1, %s13
    %p238 = scmp.lt.s32.totalorder %s13, 3
    %p239 = pnand %p237, %p238
    %p240 = pneg %p239
    // Predicated region
    $region45: #{pinn_forward.1} parent=5 // pred_check
      _
    $region46: #{pinn_forward.1} parent=5 // pred_check_branch
      %242 = sbr.rel (%p239) target = $region48
    $region47: #{pinn_forward.1} parent=5 // pred_region
      %s243 = ssub.s32 %s13, 1
      %s244 = smul.u32 16, %s18
      %p245 = scmp.lt.s32.totalorder %s244, 31
      %s246 = scalar_select %p245, %s244, 31
      %s247 = smul.addr %s246, 8
      %s248 = scalar_lea.vmem %s0, %s247
      %p249 = pneg %p39
      %p250 = pneg %p36
      %p251 = pneg %p60
      %p252 = pneg %p57
      %p253 = pneg %p81
      %p254 = pneg %p78
      %p255 = pneg %p102
      %p256 = pneg %p99
      %p257 = pneg %p123
      %p258 = pneg %p120
      %p259 = pneg %p144
      %p260 = pneg %p141
      %p261 = pneg %p165
      %p262 = pneg %p162
      %p263 = pneg %p191
      %p264 = pneg %p188
      %s265 = smul.u32 16, %s18
      %p266 = scmp.lt.s32.totalorder %s265, 31
      %s267 = scalar_select %p266, %s265, 31
      %s268 = smul.addr %s267, 8
      %s269 = scalar_lea.vmem %s7, %s268
      %s270 = smul.u32 16, %s18
      %p271 = scmp.lt.s32.totalorder %s270, 31
      %s272 = scalar_select %p271, %s270, 31
      %s273 = smul.addr %s272, 8
      %s274 = scalar_lea.vmem %s0, %s273
      %s275 = smul.u32 16, %s18
      %s276 = smul.u32 16, %s18
      %p277 = scmp.lt.s32.totalorder %s276, 31
      %s278 = scalar_select %p277, %s276, 31
      %s279 = smul.addr %s278, 8
      %s280 = scalar_lea.vmem %s7, %s279
      %s281 = smul.u32 16, %s18
      %v282 = vld [vmem:[%s274] sm:$0xff]
      %v283 = vld [vmem:[%s274 + $0x8] sm:$0xff]
      %v284 = vld [vmem:[%s274 + $0x10] sm:$0xff]
      %v285 = vld [vmem:[%s274 + $0x18] sm:$0xff]
      %v286 = vld [vmem:[%s274 + $0x20] sm:$0xff]
      %v287 = vld [vmem:[%s274 + $0x28] sm:$0xff]
      %v288 = vld [vmem:[%s274 + $0x30] sm:$0xff]
      %v289 = vld [vmem:[%s274 + $0x38] sm:$0xff]
      %v290 = vld [vmem:[%s274 + $0x40] sm:$0xff]
      %v291 = vld [vmem:[%s274 + $0x48] sm:$0xff]
      %v292 = vld [vmem:[%s274 + $0x50] sm:$0xff]
      %v293 = vld [vmem:[%s274 + $0x58] sm:$0xff]
      %v294 = vld [vmem:[%s274 + $0x60] sm:$0xff]
      %v295 = vld [vmem:[%s274 + $0x68] sm:$0xff]
      %v296 = vld [vmem:[%s274 + $0x70] sm:$0xff]
      %v297 = vld [vmem:[%s274 + $0x78] sm:$0xff]
      %v298 = vld [vmem:[%s1] sm:$0xff]
      %v299 = vld [vmem:[%s2] sm:$0x1]
      %v301 = vperm.slane %v299, 0
      %vm303 = vcmask 64512
      %v305 = vsel %vm303, %v282, 0
      %v308 = vsel %vm303, %v283, 0
      %v311 = vsel %vm303, %v284, 0
      %v314 = vsel %vm303, %v285, 0
      %v317 = vsel %vm303, %v286, 0
      %v320 = vsel %vm303, %v287, 0
      %v323 = vsel %vm303, %v288, 0
      %v326 = vsel %vm303, %v289, 0
      %v329 = vsel %vm303, %v290, 0
      %v332 = vsel %vm303, %v291, 0
      %v335 = vsel %vm303, %v292, 0
      %v338 = vsel %vm303, %v293, 0
      %v341 = vsel %vm303, %v294, 0
      %v344 = vsel %vm303, %v295, 0
      %v347 = vsel %vm303, %v296, 0
      %v350 = vsel %vm303, %v297, 0
      %352 = vmatpush.msra.mxu0 0.0
      %353 = vmatpush.msra.mxu0 0.0
      %354 = vmatpush.msra.mxu0 0.0
      %355 = vmatpush.msra.mxu0 0.0
      %356 = vmatpush.msra.mxu0 0.0
      %357 = vmatpush.msra.mxu0 0.0
      %358 = vmatpush.msra.mxu0 0.0
      %359 = vmatpush.msra.mxu0 0.0
      %360 = vmatpush.msra.mxu0 0.0
      %361 = vmatpush.msra.mxu0 0.0
      %362 = vmatpush.msra.mxu0 0.0
      %363 = vmatpush.msra.mxu0 0.0
      %364 = vmatpush.msra.mxu0 0.0
      %365 = vmatpush.msra.mxu0 0.0
      %366 = vmatpush.msra.mxu0 0.0
      %367 = vmatpush.msra.mxu0 %v298
      %368 = vmatmul.f32.gmra.mxu0 %v305
      %v369 = vpop.f32.mrf.mxu0
      %v370 = vadd.f32 %v301, %v369
      %371 = vmatmul.f32.gmra.mxu0 %v308
      %v372 = vpop.f32.mrf.mxu0
      %v373 = vadd.f32 %v301, %v372
      %374 = vmatmul.f32.gmra.mxu0 %v311
      %v375 = vpop.f32.mrf.mxu0
      %v376 = vadd.f32 %v301, %v375
      %377 = vmatmul.f32.gmra.mxu0 %v314
      %v378 = vpop.f32.mrf.mxu0
      %v379 = vadd.f32 %v301, %v378
      %380 = vmatmul.f32.gmra.mxu0 %v317
      %v381 = vpop.f32.mrf.mxu0
      %v382 = vadd.f32 %v301, %v381
      %383 = vmatmul.f32.gmra.mxu0 %v320
      %v384 = vpop.f32.mrf.mxu0
      %v385 = vadd.f32 %v301, %v384
      %386 = vmatmul.f32.gmra.mxu0 %v323
      %v387 = vpop.f32.mrf.mxu0
      %v388 = vadd.f32 %v301, %v387
      %389 = vmatmul.f32.gmra.mxu0 %v326
      %v390 = vpop.f32.mrf.mxu0
      %v391 = vadd.f32 %v301, %v390
      %392 = vmatmul.f32.gmra.mxu0 %v329
      %v393 = vpop.f32.mrf.mxu0
      %v394 = vadd.f32 %v301, %v393
      %395 = vmatmul.f32.gmra.mxu0 %v332
      %v396 = vpop.f32.mrf.mxu0
      %v397 = vadd.f32 %v301, %v396
      %398 = vmatmul.f32.gmra.mxu0 %v335
      %v399 = vpop.f32.mrf.mxu0
      %v400 = vadd.f32 %v301, %v399
      %401 = vmatmul.f32.gmra.mxu0 %v338
      %v402 = vpop.f32.mrf.mxu0
      %v403 = vadd.f32 %v301, %v402
      %404 = vmatmul.f32.gmra.mxu0 %v341
      %v405 = vpop.f32.mrf.mxu0
      %v406 = vadd.f32 %v301, %v405
      %407 = vmatmul.f32.gmra.mxu0 %v344
      %v408 = vpop.f32.mrf.mxu0
      %v409 = vadd.f32 %v301, %v408
      %410 = vmatmul.f32.gmra.mxu0 %v347
      %v411 = vpop.f32.mrf.mxu0
      %v412 = vadd.f32 %v301, %v411
      %413 = vmatmul.f32.gmra.mxu0 %v350
      %v414 = vpop.f32.mrf.mxu0
      %v415 = vadd.f32 %v301, %v414
      %416 = vdwg.mxu0
      %v417 = vtanh.pop %v370
      %v418 = vtanh.pop %v373
      %v419 = vtanh.pop %v376
      %v420 = vtanh.pop %v379
      %v421 = vtanh.pop %v382
      %v422 = vtanh.pop %v385
      %v423 = vtanh.pop %v388
      %v424 = vtanh.pop %v391
      %v425 = vtanh.pop %v394
      %v426 = vtanh.pop %v397
      %v427 = vtanh.pop %v400
      %v428 = vtanh.pop %v403
      %v429 = vtanh.pop %v406
      %v430 = vtanh.pop %v409
      %v431 = vtanh.pop %v412
      %v432 = vtanh.pop %v415
      %v433 = vld [vmem:[%s3] sm:$0xff]
      %v434 = vld [vmem:[%s3 + $0x8] sm:$0xff]
      %v435 = vld [vmem:[%s3 + $0x10] sm:$0xff]
      %v436 = vld [vmem:[%s3 + $0x18] sm:$0xff]
      %v437 = vld [vmem:[%s3 + $0x20] sm:$0xff]
      %v438 = vld [vmem:[%s3 + $0x28] sm:$0xff]
      %v439 = vld [vmem:[%s3 + $0x30] sm:$0xff]
      %v440 = vld [vmem:[%s3 + $0x38] sm:$0xff]
      %v441 = vld [vmem:[%s3 + $0x40] sm:$0xff]
      %v442 = vld [vmem:[%s3 + $0x48] sm:$0xff]
      %v443 = vld [vmem:[%s3 + $0x50] sm:$0xff]
      %v444 = vld [vmem:[%s3 + $0x58] sm:$0xff]
      %v445 = vld [vmem:[%s3 + $0x60] sm:$0xf]
      %v446 = vld [vmem:[%s4] sm:$0x1]
      %v448 = vperm.slane %v446, 0
      %vm450 = vcmask 818176
      %v452 = vsel %vm450, %v417, 0
      %v455 = vsel %vm450, %v418, 0
      %v458 = vsel %vm450, %v419, 0
      %v461 = vsel %vm450, %v420, 0
      %v464 = vsel %vm450, %v421, 0
      %v467 = vsel %vm450, %v422, 0
      %v470 = vsel %vm450, %v423, 0
      %v473 = vsel %vm450, %v424, 0
      %v476 = vsel %vm450, %v425, 0
      %v479 = vsel %vm450, %v426, 0
      %v482 = vsel %vm450, %v427, 0
      %v485 = vsel %vm450, %v428, 0
      %v488 = vsel %vm450, %v429, 0
      %v491 = vsel %vm450, %v430, 0
      %v494 = vsel %vm450, %v431, 0
      %v497 = vsel %vm450, %v432, 0
      %vm499 = vcmask 1043456
      %v501 = vsel %vm499, %v445, 0
      %503 = vmatpush.msra.mxu0 0.0
      %504 = vmatpush.msra.mxu0 0.0
      %505 = vmatpush.msra.mxu0 0.0
      %506 = vmatpush.msra.mxu0 %v501
      %507 = vmatpush.msra.mxu0 %v444
      %508 = vmatpush.msra.mxu0 %v443
      %509 = vmatpush.msra.mxu0 %v442
      %510 = vmatpush.msra.mxu0 %v441
      %511 = vmatpush.msra.mxu0 %v440
      %512 = vmatpush.msra.mxu0 %v439
      %513 = vmatpush.msra.mxu0 %v438
      %514 = vmatpush.msra.mxu0 %v437
      %515 = vmatpush.msra.mxu0 %v436
      %516 = vmatpush.msra.mxu0 %v435
      %517 = vmatpush.msra.mxu0 %v434
      %518 = vmatpush.msra.mxu0 %v433
      %519 = vmatmul.f32.gmra.mxu0 %v452
      %v520 = vpop.f32.mrf.mxu0
      %v521 = vadd.f32 %v448, %v520
      %522 = vmatmul.f32.gmra.mxu0 %v455
      %v523 = vpop.f32.mrf.mxu0
      %v524 = vadd.f32 %v448, %v523
      %525 = vmatmul.f32.gmra.mxu0 %v458
      %v526 = vpop.f32.mrf.mxu0
      %v527 = vadd.f32 %v448, %v526
      %528 = vmatmul.f32.gmra.mxu0 %v461
      %v529 = vpop.f32.mrf.mxu0
      %v530 = vadd.f32 %v448, %v529
      %531 = vmatmul.f32.gmra.mxu0 %v464
      %v532 = vpop.f32.mrf.mxu0
      %v533 = vadd.f32 %v448, %v532
      %534 = vmatmul.f32.gmra.mxu0 %v467
      %v535 = vpop.f32.mrf.mxu0
      %v536 = vadd.f32 %v448, %v535
      %537 = vmatmul.f32.gmra.mxu0 %v470
      %v538 = vpop.f32.mrf.mxu0
      %v539 = vadd.f32 %v448, %v538
      %540 = vmatmul.f32.gmra.mxu0 %v473
      %v541 = vpop.f32.mrf.mxu0
      %v542 = vadd.f32 %v448, %v541
      %543 = vmatmul.f32.gmra.mxu0 %v476
      %v544 = vpop.f32.mrf.mxu0
      %v545 = vadd.f32 %v448, %v544
      %546 = vmatmul.f32.gmra.mxu0 %v479
      %v547 = vpop.f32.mrf.mxu0
      %v548 = vadd.f32 %v448, %v547
      %549 = vmatmul.f32.gmra.mxu0 %v482
      %v550 = vpop.f32.mrf.mxu0
      %v551 = vadd.f32 %v448, %v550
      %552 = vmatmul.f32.gmra.mxu0 %v485
      %v553 = vpop.f32.mrf.mxu0
      %v554 = vadd.f32 %v448, %v553
      %555 = vmatmul.f32.gmra.mxu0 %v488
      %v556 = vpop.f32.mrf.mxu0
      %v557 = vadd.f32 %v448, %v556
      %558 = vmatmul.f32.gmra.mxu0 %v491
      %v559 = vpop.f32.mrf.mxu0
      %v560 = vadd.f32 %v448, %v559
      %561 = vmatmul.f32.gmra.mxu0 %v494
      %v562 = vpop.f32.mrf.mxu0
      %v563 = vadd.f32 %v448, %v562
      %564 = vmatmul.f32.gmra.mxu0 %v497
      %v565 = vpop.f32.mrf.mxu0
      %v566 = vadd.f32 %v448, %v565
      %567 = vdwg.mxu0
      %v568 = vtanh.pop %v521
      %v569 = vtanh.pop %v524
      %v570 = vtanh.pop %v527
      %v571 = vtanh.pop %v530
      %v572 = vtanh.pop %v533
      %v573 = vtanh.pop %v536
      %v574 = vtanh.pop %v539
      %v575 = vtanh.pop %v542
      %v576 = vtanh.pop %v545
      %v577 = vtanh.pop %v548
      %v578 = vtanh.pop %v551
      %v579 = vtanh.pop %v554
      %v580 = vtanh.pop %v557
      %v581 = vtanh.pop %v560
      %v582 = vtanh.pop %v563
      %v583 = vtanh.pop %v566
      %s584 = scalar_lea.vmem %s3, 104
      %v585 = vld [vmem:[%s584] sm:$0xff]
      %v586 = vld [vmem:[%s584 + $0x8] sm:$0xff]
      %v587 = vld [vmem:[%s584 + $0x10] sm:$0xff]
      %v588 = vld [vmem:[%s584 + $0x18] sm:$0xff]
      %v589 = vld [vmem:[%s584 + $0x20] sm:$0xff]
      %v590 = vld [vmem:[%s584 + $0x28] sm:$0xff]
      %v591 = vld [vmem:[%s584 + $0x30] sm:$0xff]
      %v592 = vld [vmem:[%s584 + $0x38] sm:$0xff]
      %v593 = vld [vmem:[%s584 + $0x40] sm:$0xff]
      %v594 = vld [vmem:[%s584 + $0x48] sm:$0xff]
      %v595 = vld [vmem:[%s584 + $0x50] sm:$0xff]
      %v596 = vld [vmem:[%s584 + $0x58] sm:$0xff]
      %v597 = vld [vmem:[%s584 + $0x60] sm:$0xf]
      %s598 = scalar_lea.vmem %s4, 1
      %v599 = vld [vmem:[%s598] sm:$0x1]
      %v601 = vperm.slane %v599, 0
      %v604 = vsel %vm450, %v568, 0
      %v607 = vsel %vm450, %v569, 0
      %v610 = vsel %vm450, %v570, 0
      %v613 = vsel %vm450, %v571, 0
      %v616 = vsel %vm450, %v572, 0
      %v619 = vsel %vm450, %v573, 0
      %v622 = vsel %vm450, %v574, 0
      %v625 = vsel %vm450, %v575, 0
      %v628 = vsel %vm450, %v576, 0
      %v631 = vsel %vm450, %v577, 0
      %v634 = vsel %vm450, %v578, 0
      %v637 = vsel %vm450, %v579, 0
      %v640 = vsel %vm450, %v580, 0
      %v643 = vsel %vm450, %v581, 0
      %v646 = vsel %vm450, %v582, 0
      %v649 = vsel %vm450, %v583, 0
      %v652 = vsel %vm499, %v597, 0
      %654 = vmatpush.msra.mxu0 0.0
      %655 = vmatpush.msra.mxu0 0.0
      %656 = vmatpush.msra.mxu0 0.0
      %657 = vmatpush.msra.mxu0 %v652
      %658 = vmatpush.msra.mxu0 %v596
      %659 = vmatpush.msra.mxu0 %v595
      %660 = vmatpush.msra.mxu0 %v594
      %661 = vmatpush.msra.mxu0 %v593
      %662 = vmatpush.msra.mxu0 %v592
      %663 = vmatpush.msra.mxu0 %v591
      %664 = vmatpush.msra.mxu0 %v590
      %665 = vmatpush.msra.mxu0 %v589
      %666 = vmatpush.msra.mxu0 %v588
      %667 = vmatpush.msra.mxu0 %v587
      %668 = vmatpush.msra.mxu0 %v586
      %669 = vmatpush.msra.mxu0 %v585
      %670 = vmatmul.f32.gmra.mxu0 %v604
      %v671 = vpop.f32.mrf.mxu0
      %v672 = vadd.f32 %v601, %v671
      %673 = vmatmul.f32.gmra.mxu0 %v607
      %v674 = vpop.f32.mrf.mxu0
      %v675 = vadd.f32 %v601, %v674
      %676 = vmatmul.f32.gmra.mxu0 %v610
      %v677 = vpop.f32.mrf.mxu0
      %v678 = vadd.f32 %v601, %v677
      %679 = vmatmul.f32.gmra.mxu0 %v613
      %v680 = vpop.f32.mrf.mxu0
      %v681 = vadd.f32 %v601, %v680
      %682 = vmatmul.f32.gmra.mxu0 %v616
      %v683 = vpop.f32.mrf.mxu0
      %v684 = vadd.f32 %v601, %v683
      %685 = vmatmul.f32.gmra.mxu0 %v619
      %v686 = vpop.f32.mrf.mxu0
      %v687 = vadd.f32 %v601, %v686
      %688 = vmatmul.f32.gmra.mxu0 %v622
      %v689 = vpop.f32.mrf.mxu0
      %v690 = vadd.f32 %v601, %v689
      %691 = vmatmul.f32.gmra.mxu0 %v625
      %v692 = vpop.f32.mrf.mxu0
      %v693 = vadd.f32 %v601, %v692
      %694 = vmatmul.f32.gmra.mxu0 %v628
      %v695 = vpop.f32.mrf.mxu0
      %v696 = vadd.f32 %v601, %v695
      %697 = vmatmul.f32.gmra.mxu0 %v631
      %v698 = vpop.f32.mrf.mxu0
      %v699 = vadd.f32 %v601, %v698
      %700 = vmatmul.f32.gmra.mxu0 %v634
      %v701 = vpop.f32.mrf.mxu0
      %v702 = vadd.f32 %v601, %v701
      %703 = vmatmul.f32.gmra.mxu0 %v637
      %v704 = vpop.f32.mrf.mxu0
      %v705 = vadd.f32 %v601, %v704
      %706 = vmatmul.f32.gmra.mxu0 %v640
      %v707 = vpop.f32.mrf.mxu0
      %v708 = vadd.f32 %v601, %v707
      %709 = vmatmul.f32.gmra.mxu0 %v643
      %v710 = vpop.f32.mrf.mxu0
      %v711 = vadd.f32 %v601, %v710
      %712 = vmatmul.f32.gmra.mxu0 %v646
      %v713 = vpop.f32.mrf.mxu0
      %v714 = vadd.f32 %v601, %v713
      %715 = vmatmul.f32.gmra.mxu0 %v649
      %v716 = vpop.f32.mrf.mxu0
      %v717 = vadd.f32 %v601, %v716
      %718 = vdwg.mxu0
      %v719 = vtanh.pop %v672
      %v720 = vtanh.pop %v675
      %v721 = vtanh.pop %v678
      %v722 = vtanh.pop %v681
      %v723 = vtanh.pop %v684
      %v724 = vtanh.pop %v687
      %v725 = vtanh.pop %v690
      %v726 = vtanh.pop %v693
      %v727 = vtanh.pop %v696
      %v728 = vtanh.pop %v699
      %v729 = vtanh.pop %v702
      %v730 = vtanh.pop %v705
      %v731 = vtanh.pop %v708
      %v732 = vtanh.pop %v711
      %v733 = vtanh.pop %v714
      %v734 = vtanh.pop %v717
      %s735 = scalar_lea.vmem %s3, 208
      %v736 = vld [vmem:[%s735] sm:$0xff]
      %v737 = vld [vmem:[%s735 + $0x8] sm:$0xff]
      %v738 = vld [vmem:[%s735 + $0x10] sm:$0xff]
      %v739 = vld [vmem:[%s735 + $0x18] sm:$0xff]
      %v740 = vld [vmem:[%s735 + $0x20] sm:$0xff]
      %v741 = vld [vmem:[%s735 + $0x28] sm:$0xff]
      %v742 = vld [vmem:[%s735 + $0x30] sm:$0xff]
      %v743 = vld [vmem:[%s735 + $0x38] sm:$0xff]
      %v744 = vld [vmem:[%s735 + $0x40] sm:$0xff]
      %v745 = vld [vmem:[%s735 + $0x48] sm:$0xff]
      %v746 = vld [vmem:[%s735 + $0x50] sm:$0xff]
      %v747 = vld [vmem:[%s735 + $0x58] sm:$0xff]
      %v748 = vld [vmem:[%s735 + $0x60] sm:$0xf]
      %s749 = scalar_lea.vmem %s4, 2
      %v750 = vld [vmem:[%s749] sm:$0x1]
      %v752 = vperm.slane %v750, 0
      %v755 = vsel %vm450, %v719, 0
      %v758 = vsel %vm450, %v720, 0
      %v761 = vsel %vm450, %v721, 0
      %v764 = vsel %vm450, %v722, 0
      %v767 = vsel %vm450, %v723, 0
      %v770 = vsel %vm450, %v724, 0
      %v773 = vsel %vm450, %v725, 0
      %v776 = vsel %vm450, %v726, 0
      %v779 = vsel %vm450, %v727, 0
      %v782 = vsel %vm450, %v728, 0
      %v785 = vsel %vm450, %v729, 0
      %v788 = vsel %vm450, %v730, 0
      %v791 = vsel %vm450, %v731, 0
      %v794 = vsel %vm450, %v732, 0
      %v797 = vsel %vm450, %v733, 0
      %v800 = vsel %vm450, %v734, 0
      %v803 = vsel %vm499, %v748, 0
      %805 = vmatpush.msra.mxu0 0.0
      %806 = vmatpush.msra.mxu0 0.0
      %807 = vmatpush.msra.mxu0 0.0
      %808 = vmatpush.msra.mxu0 %v803
      %809 = vmatpush.msra.mxu0 %v747
      %810 = vmatpush.msra.mxu0 %v746
      %811 = vmatpush.msra.mxu0 %v745
      %812 = vmatpush.msra.mxu0 %v744
      %813 = vmatpush.msra.mxu0 %v743
      %814 = vmatpush.msra.mxu0 %v742
      %815 = vmatpush.msra.mxu0 %v741
      %816 = vmatpush.msra.mxu0 %v740
      %817 = vmatpush.msra.mxu0 %v739
      %818 = vmatpush.msra.mxu0 %v738
      %819 = vmatpush.msra.mxu0 %v737
      %820 = vmatpush.msra.mxu0 %v736
      %821 = vmatmul.f32.gmra.mxu0 %v755
      %v822 = vpop.f32.mrf.mxu0
      %v823 = vadd.f32 %v752, %v822
      %824 = vmatmul.f32.gmra.mxu0 %v758
      %v825 = vpop.f32.mrf.mxu0
      %v826 = vadd.f32 %v752, %v825
      %827 = vmatmul.f32.gmra.mxu0 %v761
      %v828 = vpop.f32.mrf.mxu0
      %v829 = vadd.f32 %v752, %v828
      %830 = vmatmul.f32.gmra.mxu0 %v764
      %v831 = vpop.f32.mrf.mxu0
      %v832 = vadd.f32 %v752, %v831
      %833 = vmatmul.f32.gmra.mxu0 %v767
      %v834 = vpop.f32.mrf.mxu0
      %v835 = vadd.f32 %v752, %v834
      %836 = vmatmul.f32.gmra.mxu0 %v770
      %v837 = vpop.f32.mrf.mxu0
      %v838 = vadd.f32 %v752, %v837
      %839 = vmatmul.f32.gmra.mxu0 %v773
      %v840 = vpop.f32.mrf.mxu0
      %v841 = vadd.f32 %v752, %v840
      %842 = vmatmul.f32.gmra.mxu0 %v776
      %v843 = vpop.f32.mrf.mxu0
      %v844 = vadd.f32 %v752, %v843
      %845 = vmatmul.f32.gmra.mxu0 %v779
      %v846 = vpop.f32.mrf.mxu0
      %v847 = vadd.f32 %v752, %v846
      %848 = vmatmul.f32.gmra.mxu0 %v782
      %v849 = vpop.f32.mrf.mxu0
      %v850 = vadd.f32 %v752, %v849
      %851 = vmatmul.f32.gmra.mxu0 %v785
      %v852 = vpop.f32.mrf.mxu0
      %v853 = vadd.f32 %v752, %v852
      %854 = vmatmul.f32.gmra.mxu0 %v788
      %v855 = vpop.f32.mrf.mxu0
      %v856 = vadd.f32 %v752, %v855
      %857 = vmatmul.f32.gmra.mxu0 %v791
      %v858 = vpop.f32.mrf.mxu0
      %v859 = vadd.f32 %v752, %v858
      %860 = vmatmul.f32.gmra.mxu0 %v794
      %v861 = vpop.f32.mrf.mxu0
      %v862 = vadd.f32 %v752, %v861
      %863 = vmatmul.f32.gmra.mxu0 %v797
      %v864 = vpop.f32.mrf.mxu0
      %v865 = vadd.f32 %v752, %v864
      %866 = vmatmul.f32.gmra.mxu0 %v800
      %v867 = vpop.f32.mrf.mxu0
      %v868 = vadd.f32 %v752, %v867
      %869 = vdwg.mxu0
      %v870 = vtanh.pop %v823
      %v871 = vtanh.pop %v826
      %v872 = vtanh.pop %v829
      %v873 = vtanh.pop %v832
      %v874 = vtanh.pop %v835
      %v875 = vtanh.pop %v838
      %v876 = vtanh.pop %v841
      %v877 = vtanh.pop %v844
      %v878 = vtanh.pop %v847
      %v879 = vtanh.pop %v850
      %v880 = vtanh.pop %v853
      %v881 = vtanh.pop %v856
      %v882 = vtanh.pop %v859
      %v883 = vtanh.pop %v862
      %v884 = vtanh.pop %v865
      %v885 = vtanh.pop %v868
      %s886 = scalar_lea.vmem %s3, 312
      %v887 = vld [vmem:[%s886] sm:$0xff]
      %v888 = vld [vmem:[%s886 + $0x8] sm:$0xff]
      %v889 = vld [vmem:[%s886 + $0x10] sm:$0xff]
      %v890 = vld [vmem:[%s886 + $0x18] sm:$0xff]
      %v891 = vld [vmem:[%s886 + $0x20] sm:$0xff]
      %v892 = vld [vmem:[%s886 + $0x28] sm:$0xff]
      %v893 = vld [vmem:[%s886 + $0x30] sm:$0xff]
      %v894 = vld [vmem:[%s886 + $0x38] sm:$0xff]
      %v895 = vld [vmem:[%s886 + $0x40] sm:$0xff]
      %v896 = vld [vmem:[%s886 + $0x48] sm:$0xff]
      %v897 = vld [vmem:[%s886 + $0x50] sm:$0xff]
      %v898 = vld [vmem:[%s886 + $0x58] sm:$0xff]
      %v899 = vld [vmem:[%s886 + $0x60] sm:$0xf]
      %s900 = scalar_lea.vmem %s4, 3
      %v901 = vld [vmem:[%s900] sm:$0x1]
      %v903 = vperm.slane %v901, 0
      %v906 = vsel %vm450, %v870, 0
      %v909 = vsel %vm450, %v871, 0
      %v912 = vsel %vm450, %v872, 0
      %v915 = vsel %vm450, %v873, 0
      %v918 = vsel %vm450, %v874, 0
      %v921 = vsel %vm450, %v875, 0
      %v924 = vsel %vm450, %v876, 0
      %v927 = vsel %vm450, %v877, 0
      %v930 = vsel %vm450, %v878, 0
      %v933 = vsel %vm450, %v879, 0
      %v936 = vsel %vm450, %v880, 0
      %v939 = vsel %vm450, %v881, 0
      %v942 = vsel %vm450, %v882, 0
      %v945 = vsel %vm450, %v883, 0
      %v948 = vsel %vm450, %v884, 0
      %v951 = vsel %vm450, %v885, 0
      %v954 = vsel %vm499, %v899, 0
      %956 = vmatpush.msra.mxu0 0.0
      %957 = vmatpush.msra.mxu0 0.0
      %958 = vmatpush.msra.mxu0 0.0
      %959 = vmatpush.msra.mxu0 %v954
      %960 = vmatpush.msra.mxu0 %v898
      %961 = vmatpush.msra.mxu0 %v897
      %962 = vmatpush.msra.mxu0 %v896
      %963 = vmatpush.msra.mxu0 %v895
      %964 = vmatpush.msra.mxu0 %v894
      %965 = vmatpush.msra.mxu0 %v893
      %966 = vmatpush.msra.mxu0 %v892
      %967 = vmatpush.msra.mxu0 %v891
      %968 = vmatpush.msra.mxu0 %v890
      %969 = vmatpush.msra.mxu0 %v889
      %970 = vmatpush.msra.mxu0 %v888
      %971 = vmatpush.msra.mxu0 %v887
      %972 = vmatmul.f32.gmra.mxu0 %v906
      %v973 = vpop.f32.mrf.mxu0
      %v974 = vadd.f32 %v903, %v973
      %975 = vmatmul.f32.gmra.mxu0 %v909
      %v976 = vpop.f32.mrf.mxu0
      %v977 = vadd.f32 %v903, %v976
      %978 = vmatmul.f32.gmra.mxu0 %v912
      %v979 = vpop.f32.mrf.mxu0
      %v980 = vadd.f32 %v903, %v979
      %981 = vmatmul.f32.gmra.mxu0 %v915
      %v982 = vpop.f32.mrf.mxu0
      %v983 = vadd.f32 %v903, %v982
      %984 = vmatmul.f32.gmra.mxu0 %v918
      %v985 = vpop.f32.mrf.mxu0
      %v986 = vadd.f32 %v903, %v985
      %987 = vmatmul.f32.gmra.mxu0 %v921
      %v988 = vpop.f32.mrf.mxu0
      %v989 = vadd.f32 %v903, %v988
      %990 = vmatmul.f32.gmra.mxu0 %v924
      %v991 = vpop.f32.mrf.mxu0
      %v992 = vadd.f32 %v903, %v991
      %993 = vmatmul.f32.gmra.mxu0 %v927
      %v994 = vpop.f32.mrf.mxu0
      %v995 = vadd.f32 %v903, %v994
      %996 = vmatmul.f32.gmra.mxu0 %v930
      %v997 = vpop.f32.mrf.mxu0
      %v998 = vadd.f32 %v903, %v997
      %999 = vmatmul.f32.gmra.mxu0 %v933
      %v1000 = vpop.f32.mrf.mxu0
      %v1001 = vadd.f32 %v903, %v1000
      %1002 = vmatmul.f32.gmra.mxu0 %v936
      %v1003 = vpop.f32.mrf.mxu0
      %v1004 = vadd.f32 %v903, %v1003
      %1005 = vmatmul.f32.gmra.mxu0 %v939
      %v1006 = vpop.f32.mrf.mxu0
      %v1007 = vadd.f32 %v903, %v1006
      %1008 = vmatmul.f32.gmra.mxu0 %v942
      %v1009 = vpop.f32.mrf.mxu0
      %v1010 = vadd.f32 %v903, %v1009
      %1011 = vmatmul.f32.gmra.mxu0 %v945
      %v1012 = vpop.f32.mrf.mxu0
      %v1013 = vadd.f32 %v903, %v1012
      %1014 = vmatmul.f32.gmra.mxu0 %v948
      %v1015 = vpop.f32.mrf.mxu0
      %v1016 = vadd.f32 %v903, %v1015
      %1017 = vmatmul.f32.gmra.mxu0 %v951
      %v1018 = vpop.f32.mrf.mxu0
      %v1019 = vadd.f32 %v903, %v1018
      %1020 = vdwg.mxu0
      %v1021 = vtanh.pop %v974
      %v1022 = vtanh.pop %v977
      %v1023 = vtanh.pop %v980
      %v1024 = vtanh.pop %v983
      %v1025 = vtanh.pop %v986
      %v1026 = vtanh.pop %v989
      %v1027 = vtanh.pop %v992
      %v1028 = vtanh.pop %v995
      %v1029 = vtanh.pop %v998
      %v1030 = vtanh.pop %v1001
      %v1031 = vtanh.pop %v1004
      %v1032 = vtanh.pop %v1007
      %v1033 = vtanh.pop %v1010
      %v1034 = vtanh.pop %v1013
      %v1035 = vtanh.pop %v1016
      %v1036 = vtanh.pop %v1019
      %s1037 = scalar_lea.vmem %s3, 416
      %v1038 = vld [vmem:[%s1037] sm:$0xff]
      %v1039 = vld [vmem:[%s1037 + $0x8] sm:$0xff]
      %v1040 = vld [vmem:[%s1037 + $0x10] sm:$0xff]
      %v1041 = vld [vmem:[%s1037 + $0x18] sm:$0xff]
      %v1042 = vld [vmem:[%s1037 + $0x20] sm:$0xff]
      %v1043 = vld [vmem:[%s1037 + $0x28] sm:$0xff]
      %v1044 = vld [vmem:[%s1037 + $0x30] sm:$0xff]
      %v1045 = vld [vmem:[%s1037 + $0x38] sm:$0xff]
      %v1046 = vld [vmem:[%s1037 + $0x40] sm:$0xff]
      %v1047 = vld [vmem:[%s1037 + $0x48] sm:$0xff]
      %v1048 = vld [vmem:[%s1037 + $0x50] sm:$0xff]
      %v1049 = vld [vmem:[%s1037 + $0x58] sm:$0xff]
      %v1050 = vld [vmem:[%s1037 + $0x60] sm:$0xf]
      %s1051 = scalar_lea.vmem %s4, 4
      %v1052 = vld [vmem:[%s1051] sm:$0x1]
      %v1054 = vperm.slane %v1052, 0
      %v1057 = vsel %vm450, %v1021, 0
      %v1060 = vsel %vm450, %v1022, 0
      %v1063 = vsel %vm450, %v1023, 0
      %v1066 = vsel %vm450, %v1024, 0
      %v1069 = vsel %vm450, %v1025, 0
      %v1072 = vsel %vm450, %v1026, 0
      %v1075 = vsel %vm450, %v1027, 0
      %v1078 = vsel %vm450, %v1028, 0
      %v1081 = vsel %vm450, %v1029, 0
      %v1084 = vsel %vm450, %v1030, 0
      %v1087 = vsel %vm450, %v1031, 0
      %v1090 = vsel %vm450, %v1032, 0
      %v1093 = vsel %vm450, %v1033, 0
      %v1096 = vsel %vm450, %v1034, 0
      %v1099 = vsel %vm450, %v1035, 0
      %v1102 = vsel %vm450, %v1036, 0
      %v1105 = vsel %vm499, %v1050, 0
      %1107 = vmatpush.msra.mxu0 0.0
      %1108 = vmatpush.msra.mxu0 0.0
      %1109 = vmatpush.msra.mxu0 0.0
      %1110 = vmatpush.msra.mxu0 %v1105
      %1111 = vmatpush.msra.mxu0 %v1049
      %1112 = vmatpush.msra.mxu0 %v1048
      %1113 = vmatpush.msra.mxu0 %v1047
      %1114 = vmatpush.msra.mxu0 %v1046
      %1115 = vmatpush.msra.mxu0 %v1045
      %1116 = vmatpush.msra.mxu0 %v1044
      %1117 = vmatpush.msra.mxu0 %v1043
      %1118 = vmatpush.msra.mxu0 %v1042
      %1119 = vmatpush.msra.mxu0 %v1041
      %1120 = vmatpush.msra.mxu0 %v1040
      %1121 = vmatpush.msra.mxu0 %v1039
      %1122 = vmatpush.msra.mxu0 %v1038
      %1123 = vmatmul.f32.gmra.mxu0 %v1057
      %v1124 = vpop.f32.mrf.mxu0
      %v1125 = vadd.f32 %v1054, %v1124
      %1126 = vmatmul.f32.gmra.mxu0 %v1060
      %v1127 = vpop.f32.mrf.mxu0
      %v1128 = vadd.f32 %v1054, %v1127
      %1129 = vmatmul.f32.gmra.mxu0 %v1063
      %v1130 = vpop.f32.mrf.mxu0
      %v1131 = vadd.f32 %v1054, %v1130
      %1132 = vmatmul.f32.gmra.mxu0 %v1066
      %v1133 = vpop.f32.mrf.mxu0
      %v1134 = vadd.f32 %v1054, %v1133
      %1135 = vmatmul.f32.gmra.mxu0 %v1069
      %v1136 = vpop.f32.mrf.mxu0
      %v1137 = vadd.f32 %v1054, %v1136
      %1138 = vmatmul.f32.gmra.mxu0 %v1072
      %v1139 = vpop.f32.mrf.mxu0
      %v1140 = vadd.f32 %v1054, %v1139
      %1141 = vmatmul.f32.gmra.mxu0 %v1075
      %v1142 = vpop.f32.mrf.mxu0
      %v1143 = vadd.f32 %v1054, %v1142
      %1144 = vmatmul.f32.gmra.mxu0 %v1078
      %v1145 = vpop.f32.mrf.mxu0
      %v1146 = vadd.f32 %v1054, %v1145
      %1147 = vmatmul.f32.gmra.mxu0 %v1081
      %v1148 = vpop.f32.mrf.mxu0
      %v1149 = vadd.f32 %v1054, %v1148
      %1150 = vmatmul.f32.gmra.mxu0 %v1084
      %v1151 = vpop.f32.mrf.mxu0
      %v1152 = vadd.f32 %v1054, %v1151
      %1153 = vmatmul.f32.gmra.mxu0 %v1087
      %v1154 = vpop.f32.mrf.mxu0
      %v1155 = vadd.f32 %v1054, %v1154
      %1156 = vmatmul.f32.gmra.mxu0 %v1090
      %v1157 = vpop.f32.mrf.mxu0
      %v1158 = vadd.f32 %v1054, %v1157
      %1159 = vmatmul.f32.gmra.mxu0 %v1093
      %v1160 = vpop.f32.mrf.mxu0
      %v1161 = vadd.f32 %v1054, %v1160
      %1162 = vmatmul.f32.gmra.mxu0 %v1096
      %v1163 = vpop.f32.mrf.mxu0
      %v1164 = vadd.f32 %v1054, %v1163
      %1165 = vmatmul.f32.gmra.mxu0 %v1099
      %v1166 = vpop.f32.mrf.mxu0
      %v1167 = vadd.f32 %v1054, %v1166
      %1168 = vmatmul.f32.gmra.mxu0 %v1102
      %v1169 = vpop.f32.mrf.mxu0
      %v1170 = vadd.f32 %v1054, %v1169
      %1171 = vdwg.mxu0
      %v1172 = vtanh.pop %v1125
      %v1173 = vtanh.pop %v1128
      %v1174 = vtanh.pop %v1131
      %v1175 = vtanh.pop %v1134
      %v1176 = vtanh.pop %v1137
      %v1177 = vtanh.pop %v1140
      %v1178 = vtanh.pop %v1143
      %v1179 = vtanh.pop %v1146
      %v1180 = vtanh.pop %v1149
      %v1181 = vtanh.pop %v1152
      %v1182 = vtanh.pop %v1155
      %v1183 = vtanh.pop %v1158
      %v1184 = vtanh.pop %v1161
      %v1185 = vtanh.pop %v1164
      %v1186 = vtanh.pop %v1167
      %v1187 = vtanh.pop %v1170
      %v1188 = vld [vmem:[%s5] sm:$0xff]
      %v1189 = vld [vmem:[%s5 + $0x8] sm:$0xff]
      %v1190 = vld [vmem:[%s5 + $0x10] sm:$0xff]
      %v1191 = vld [vmem:[%s5 + $0x18] sm:$0xff]
      %v1192 = vld [vmem:[%s5 + $0x20] sm:$0xff]
      %v1193 = vld [vmem:[%s5 + $0x28] sm:$0xff]
      %v1194 = vld [vmem:[%s5 + $0x30] sm:$0xff]
      %v1195 = vld [vmem:[%s5 + $0x38] sm:$0xff]
      %v1196 = vld [vmem:[%s5 + $0x40] sm:$0xff]
      %v1197 = vld [vmem:[%s5 + $0x48] sm:$0xff]
      %v1198 = vld [vmem:[%s5 + $0x50] sm:$0xff]
      %v1199 = vld [vmem:[%s5 + $0x58] sm:$0xff]
      %v1200 = vld [vmem:[%s5 + $0x60] sm:$0xf]
      %v1201 = vld [vmem:[%s6] sm:$0x1]
      %v1203 = vperm.slane %v1201, 0
      %v1206 = vsel %vm450, %v1172, 0
      %v1209 = vsel %vm450, %v1173, 0
      %v1212 = vsel %vm450, %v1174, 0
      %v1215 = vsel %vm450, %v1175, 0
      %v1218 = vsel %vm450, %v1176, 0
      %v1221 = vsel %vm450, %v1177, 0
      %v1224 = vsel %vm450, %v1178, 0
      %v1227 = vsel %vm450, %v1179, 0
      %v1230 = vsel %vm450, %v1180, 0
      %v1233 = vsel %vm450, %v1181, 0
      %v1236 = vsel %vm450, %v1182, 0
      %v1239 = vsel %vm450, %v1183, 0
      %v1242 = vsel %vm450, %v1184, 0
      %v1245 = vsel %vm450, %v1185, 0
      %v1248 = vsel %vm450, %v1186, 0
      %v1251 = vsel %vm450, %v1187, 0
      %v1254 = vsel %vm499, %v1200, 0
      %1256 = vmatpush.msra.mxu0 0.0
      %1257 = vmatpush.msra.mxu0 0.0
      %1258 = vmatpush.msra.mxu0 0.0
      %1259 = vmatpush.msra.mxu0 %v1254
      %1260 = vmatpush.msra.mxu0 %v1199
      %1261 = vmatpush.msra.mxu0 %v1198
      %1262 = vmatpush.msra.mxu0 %v1197
      %1263 = vmatpush.msra.mxu0 %v1196
      %1264 = vmatpush.msra.mxu0 %v1195
      %1265 = vmatpush.msra.mxu0 %v1194
      %1266 = vmatpush.msra.mxu0 %v1193
      %1267 = vmatpush.msra.mxu0 %v1192
      %1268 = vmatpush.msra.mxu0 %v1191
      %1269 = vmatpush.msra.mxu0 %v1190
      %1270 = vmatpush.msra.mxu0 %v1189
      %1271 = vmatpush.msra.mxu0 %v1188
      %1272 = vmatmul.f32.gmra.mxu0 %v1206
      %v1273 = vpop.f32.mrf.mxu0
      %v1274 = vadd.f32 %v1203, %v1273
      %1275 = vmatmul.f32.gmra.mxu0 %v1209
      %v1276 = vpop.f32.mrf.mxu0
      %v1277 = vadd.f32 %v1203, %v1276
      %1278 = vmatmul.f32.gmra.mxu0 %v1212
      %v1279 = vpop.f32.mrf.mxu0
      %v1280 = vadd.f32 %v1203, %v1279
      %1281 = vmatmul.f32.gmra.mxu0 %v1215
      %v1282 = vpop.f32.mrf.mxu0
      %v1283 = vadd.f32 %v1203, %v1282
      %1284 = vmatmul.f32.gmra.mxu0 %v1218
      %v1285 = vpop.f32.mrf.mxu0
      %v1286 = vadd.f32 %v1203, %v1285
      %1287 = vmatmul.f32.gmra.mxu0 %v1221
      %v1288 = vpop.f32.mrf.mxu0
      %v1289 = vadd.f32 %v1203, %v1288
      %1290 = vmatmul.f32.gmra.mxu0 %v1224
      %v1291 = vpop.f32.mrf.mxu0
      %v1292 = vadd.f32 %v1203, %v1291
      %1293 = vmatmul.f32.gmra.mxu0 %v1227
      %v1294 = vpop.f32.mrf.mxu0
      %v1295 = vadd.f32 %v1203, %v1294
      %1296 = vmatmul.f32.gmra.mxu0 %v1230
      %v1297 = vpop.f32.mrf.mxu0
      %v1298 = vadd.f32 %v1203, %v1297
      %1299 = vmatmul.f32.gmra.mxu0 %v1233
      %v1300 = vpop.f32.mrf.mxu0
      %v1301 = vadd.f32 %v1203, %v1300
      %1302 = vmatmul.f32.gmra.mxu0 %v1236
      %v1303 = vpop.f32.mrf.mxu0
      %v1304 = vadd.f32 %v1203, %v1303
      %1305 = vmatmul.f32.gmra.mxu0 %v1239
      %v1306 = vpop.f32.mrf.mxu0
      %v1307 = vadd.f32 %v1203, %v1306
      %1308 = vmatmul.f32.gmra.mxu0 %v1242
      %v1309 = vpop.f32.mrf.mxu0
      %v1310 = vadd.f32 %v1203, %v1309
      %1311 = vmatmul.f32.gmra.mxu0 %v1245
      %v1312 = vpop.f32.mrf.mxu0
      %v1313 = vadd.f32 %v1203, %v1312
      %1314 = vmatmul.f32.gmra.mxu0 %v1248
      %v1315 = vpop.f32.mrf.mxu0
      %v1316 = vadd.f32 %v1203, %v1315
      %1317 = vmatmul.f32.gmra.mxu0 %v1251
      %v1318 = vpop.f32.mrf.mxu0
      %v1319 = vadd.f32 %v1203, %v1318
      %1320 = vdwg.mxu0
      %1321 = vst [vmem:[%s280] sm:$0xff] %v1274
      %1322 = vst [vmem:[%s280 + $0x8] sm:$0xff] %v1277
      %1323 = vst [vmem:[%s280 + $0x10] sm:$0xff] %v1280
      %1324 = vst [vmem:[%s280 + $0x18] sm:$0xff] %v1283
      %1325 = vst [vmem:[%s280 + $0x20] sm:$0xff] %v1286
      %1326 = vst [vmem:[%s280 + $0x28] sm:$0xff] %v1289
      %1327 = vst [vmem:[%s280 + $0x30] sm:$0xff] %v1292
      %1328 = vst [vmem:[%s280 + $0x38] sm:$0xff] %v1295
      %1329 = vst [vmem:[%s280 + $0x40] sm:$0xff] %v1298
      %1330 = vst [vmem:[%s280 + $0x48] sm:$0xff] %v1301
      %1331 = vst [vmem:[%s280 + $0x50] sm:$0xff] %v1304
      %1332 = vst [vmem:[%s280 + $0x58] sm:$0xff] %v1307
      %1333 = vst [vmem:[%s280 + $0x60] sm:$0xff] %v1310
      %1334 = vst [vmem:[%s280 + $0x68] sm:$0xff] %v1313
      %1335 = vst [vmem:[%s280 + $0x70] sm:$0xff] %v1316
      %1336 = vst [vmem:[%s280 + $0x78] sm:$0xff] %v1319
      %s1337 = smul.u32 16, %s18
      %p1338 = scmp.lt.s32.totalorder %s1337, 31
      %s1339 = scalar_select %p1338, %s1337, 31
      %s1340 = smul.addr %s1339, 8
      %s1341 = scalar_lea.vmem %s7, %s1340
      // Predicated region
      $region49: #{pinn_forward.1} parent=47 // pred_check
        %p1342 = pneg %p188
      $region50: #{pinn_forward.1} parent=47 // pred_check_branch
        %1344 = sbr.rel (%p1342) target = $region52
      $region51: #{pinn_forward.1} parent=47 // pred_region
        %s1345 = smul.u32 16, %s18
      $region52: #{pinn_forward.1} parent=47 // pred_fallthru
        _
    $region48: #{pinn_forward.1} parent=5 // pred_fallthru
      _
    %p1346 = scmp.le.s32.totalorder 2, %s13
    // Predicated region
    $region53: #{pinn_forward.1} parent=5 // pred_check
      %p1347 = pneg %p1346
    $region54: #{pinn_forward.1} parent=5 // pred_check_branch
      %1349 = sbr.rel (%p1347) target = $region56
    $region55: #{pinn_forward.1} parent=5 // pred_region
      %s1350 = ssub.s32 %s13, 2
      // Predicated region
      $region57: #{pinn_forward.1} parent=55 // pred_check
        %p1351 = pneg %p194
      $region58: #{pinn_forward.1} parent=55 // pred_check_branch
        %1353 = sbr.rel (%p1351) target = $region60
      $region59: #{pinn_forward.1} parent=55 // pred_region
        %s1354 = smul.u32 16, %s19
        %p1355 = scmp.lt.s32.totalorder %s1354, 31
        %s1356 = scalar_select %p1355, %s1354, 31
        %s1357 = smul.addr %s1356, 8
        %s1358 = scalar_lea.vmem %s7, %s1357
      $region60: #{pinn_forward.1} parent=55 // pred_fallthru
        _
    $region56: #{pinn_forward.1} parent=5 // pred_fallthru
      _
  $region6: #{pinn_forward.1} parent=0 // loop_footer
    %s17 = sadd.s32 1, %s13
  $region7: #{pinn_forward.1} parent=0 // loop_footer_branch
    %12 = sbr.rel target = $region3
  $region8: #{pinn_forward.1} parent=0 // loop_exit
    _

</llo_original>
